<compile_context>
chip_gen: v7x
topology: tpu7x:2x2x1
jax: 0.10.0
libtpu: 0.0.40
codegen_flags: <defaults>
</compile_context>

<pallas_src>
import functools
import math

import jax
import jax.numpy as jnp
from jax.experimental import pallas as pl
from jax.experimental.pallas import tpu as pltpu


def _round_up(x: int, m: int) -> int:
    return (x + m - 1) // m * m


def _fused_linear_block_kernel(x_ref, w_ref, affine_ref, o_ref, *, d_real):
    # x_ref:      (T, H)   f32 activations (row tile)
    # w_ref:      (H, Dp)  bf16 weight, zero-padded beyond d_real
    # affine_ref: (8, Dp)  f32: row 0 = bias, row 1 = gamma, row 2 = beta, rest 0
    # o_ref:      (T, Dp)
    x = x_ref[...].astype(jnp.bfloat16)
    w = w_ref[...]
    affine = affine_ref[...]
    b = affine[0:1, :]
    g = affine[1:2, :]
    beta = affine[2:3, :]

    # Linear: bf16 MXU inputs, f32 accumulation. Padded columns of w/b are zero,
    # so y[:, d_real:] == 0 exactly.
    y = jnp.dot(x, w, preferred_element_type=jnp.float32) + b

    # LayerNorm over the real D columns, one-pass statistics (padded cols contribute 0).
    inv_d = jnp.float32(1.0 / d_real)
    s1 = jnp.sum(y, axis=-1, keepdims=True)
    s2 = jnp.sum(y * y, axis=-1, keepdims=True)
    mu = s1 * inv_d
    var = s2 * inv_d - mu * mu
    y_hat = (y - mu) * jax.lax.rsqrt(var + 1e-5)
    # gamma/beta are zero in padded cols -> y_ln (and hence the output) is 0 there.
    y_ln = y_hat * g + beta

    # Exact-erf GELU (torch.nn.GELU default).
    out = 0.5 * y_ln * (1.0 + jax.lax.erf(y_ln * jnp.float32(1.0 / math.sqrt(2.0))))

    o_ref[...] = out.astype(o_ref.dtype)


def data_format(ic_tokens, ner_tokens, params, *, tile_n=512):
    """DataFormat.forward: two LinearBlocks fused into one Pallas call."""
    H = ic_tokens.shape[-1]
    D = params["ic"]["b"].shape[-1]
    Dp = _round_up(max(D, 128), 128)  # lane-dense output width

    ic2 = ic_tokens.reshape(-1, H)
    ner2 = ner_tokens.reshape(-1, H)
    n_ic, n_ner = ic2.shape[0], ner2.shape[0]
    N = _round_up(max(n_ic, n_ner, 8), 8)

    # Stack the two streams on a leading axis of size 2 (zero-pad rows if needed).
    if n_ic == N and n_ner == N:
        x = jnp.stack([ic2, ner2], axis=0)
    else:
        x = jnp.zeros((2, N, H), dtype=ic2.dtype)
        x = x.at[0, :n_ic, :].set(ic2).at[1, :n_ner, :].set(ner2)

    def pad_block_params(p):
        w = p["w_t"].astype(jnp.bfloat16)              # (H, D)
        w = jnp.pad(w, ((0, 0), (0, Dp - D)))          # (H, Dp), zero-padded cols
        affine = jnp.zeros((8, Dp), jnp.float32)
        affine = affine.at[0, :D].set(p["b"].astype(jnp.float32))
        affine = affine.at[1, :D].set(p["gamma"].astype(jnp.float32))
        affine = affine.at[2, :D].set(p["beta"].astype(jnp.float32))
        return w, affine

    w_ic, a_ic = pad_block_params(params["ic"])
    w_ner, a_ner = pad_block_params(params["ner"])
    w = jnp.stack([w_ic, w_ner], axis=0)        # (2, H, Dp) bf16
    affine = jnp.stack([a_ic, a_ner], axis=0)   # (2, 8, Dp) f32

    # Large row tiles amortize the ~0.35 us per-grid-step overhead; clamp to the
    # problem size so tiny demos do not DMA huge padded blocks.
    tile_rows = min(_round_up(tile_n, 8), N)
    grid = (2, pl.cdiv(N, tile_rows))

    out = pl.pallas_call(
        functools.partial(_fused_linear_block_kernel, d_real=D),
        out_shape=jax.ShapeDtypeStruct((2, N, Dp), ic_tokens.dtype),
        grid_spec=pltpu.PrefetchScalarGridSpec(
            num_scalar_prefetch=0,
            grid=grid,
            in_specs=[
                # activations: stream row tiles
                pl.BlockSpec((None, tile_rows, H), lambda blk, i: (blk, i, 0)),
                # weight + packed affine params: resident across the row axis
                # (index maps depend only on the outer block axis).
                pl.BlockSpec((None, H, Dp), lambda blk, i: (blk, 0, 0)),
                pl.BlockSpec((None, 8, Dp), lambda blk, i: (blk, 0, 0)),
            ],
            out_specs=pl.BlockSpec((None, tile_rows, Dp), lambda blk, i: (blk, i, 0)),
        ),
        compiler_params=pltpu.CompilerParams(
            dimension_semantics=("parallel", "parallel"),
        ),
    )(x, w, affine)

    ic_out = out[0, :n_ic, :D].reshape(ic_tokens.shape[:-1] + (D,))
    ner_out = out[1, :n_ner, :D].reshape(ner_tokens.shape[:-1] + (D,))
    return ic_out, ner_out


def init_params(key, hidden_size, dim):
    """Deterministic synthetic params mirroring the torch module shapes."""

    def one_block(k):
        k1, k2 = jax.random.split(k)
        bound = 1.0 / jnp.sqrt(hidden_size)
        # torch Linear weight is (dim, hidden); stored pre-transposed (hidden, dim), bf16.
        w_t = jax.random.uniform(k1, (hidden_size, dim), jnp.float32, -bound, bound)
        b = jax.random.uniform(k2, (dim,), jnp.float32, -bound, bound)
        return {
            "w_t": w_t.astype(jnp.bfloat16),
            "b": b,
            "gamma": jnp.ones((dim,), jnp.float32),
            "beta": jnp.zeros((dim,), jnp.float32),
        }

    k_ic, k_ner = jax.random.split(key)
    return {"ic": one_block(k_ic), "ner": one_block(k_ner)}


if __name__ == "__main__":
    hidden_size = 32
    dim = 64
    batch, seq = 2, 8

    key = jax.random.PRNGKey(0)
    k_p, k_ic, k_ner = jax.random.split(key, 3)

    params = init_params(k_p, hidden_size, dim)
    ic_tokens = jax.random.normal(k_ic, (batch, seq, hidden_size), jnp.float32)
    ner_tokens = jax.random.normal(k_ner, (batch, seq, hidden_size), jnp.float32)

    fwd = jax.jit(functools.partial(data_format, params=params))
    ic_out, ner_out = fwd(ic_tokens, ner_tokens)
    jax.block_until_ready((ic_out, ner_out))

    assert ic_out.shape == (batch, seq, dim)
    assert ner_out.shape == (batch, seq, dim)

    # Reference in plain JAX using the same bf16-matmul / f32-accumulate path.
    def ref_block(x, p):
        y = jnp.dot(
            x.astype(jnp.bfloat16), p["w_t"], preferred_element_type=jnp.float32
        ) + p["b"]
        mu = y.mean(-1, keepdims=True)
        var = ((y - mu) ** 2).mean(-1, keepdims=True)
        yh = (y - mu) / jnp.sqrt(var + 1e-5) * p["gamma"] + p["beta"]
        return 0.5 * yh * (1.0 + jax.lax.erf(yh / jnp.sqrt(2.0)))

    ref_ic = ref_block(ic_tokens, params["ic"])
    ref_ner = ref_block(ner_tokens, params["ner"])
    assert jnp.allclose(ic_out, ref_ic, atol=1e-2, rtol=1e-2)
    assert jnp.allclose(ner_out, ref_ner, atol=1e-2, rtol=1e-2)

    print("KERNEL_OK")
</pallas_src>

<mosaic_0001>
module attributes {stable_mosaic.version = 11 : i64} {
  func.func @_fused_linear_block_kernel(%arg0: i32, %arg1: i32, %arg2: memref<1x16x32xf32, #tpu.memory_space<vmem>>, %arg3: memref<1x32x128xbf16, #tpu.memory_space<vmem>>, %arg4: memref<1x8x128xf32, #tpu.memory_space<vmem>>, %arg5: memref<1x16x128xf32, #tpu.memory_space<vmem>>) attributes {dimension_semantics = [#tpu.dimension_semantics<parallel>, #tpu.dimension_semantics<parallel>], iteration_bounds = array<i64: 2, 1>, scalar_prefetch = 0 : i64, scratch_operands = 0 : i64, tpu.core_type = #tpu.core_type<tc>, window_params = [{transform_indices = @transform_0, window_bounds = array<i64: 1, 16, 32>}, {transform_indices = @transform_1, window_bounds = array<i64: 1, 32, 128>}, {transform_indices = @transform_2, window_bounds = array<i64: 1, 8, 128>}, {transform_indices = @transform_3, window_bounds = array<i64: 1, 16, 128>}]} {
    %c0 = arith.constant 0 : index
    %c0_0 = arith.constant 0 : index
    %c0_1 = arith.constant 0 : index
    %0 = vector.load %arg2[%c0, %c0_0, %c0_1] : memref<1x16x32xf32, #tpu.memory_space<vmem>>, vector<1x16x32xf32>
    %1 = vector.shape_cast %0 : vector<1x16x32xf32> to vector<16x32xf32>
    %2 = arith.truncf %1 : vector<16x32xf32> to vector<16x32xbf16>
    %c0_2 = arith.constant 0 : index
    %c0_3 = arith.constant 0 : index
    %c0_4 = arith.constant 0 : index
    %3 = vector.load %arg3[%c0_2, %c0_3, %c0_4] : memref<1x32x128xbf16, #tpu.memory_space<vmem>>, vector<1x32x128xbf16>
    %4 = vector.shape_cast %3 : vector<1x32x128xbf16> to vector<32x128xbf16>
    %c0_5 = arith.constant 0 : index
    %c0_6 = arith.constant 0 : index
    %c0_7 = arith.constant 0 : index
    %5 = vector.load %arg4[%c0_5, %c0_6, %c0_7] : memref<1x8x128xf32, #tpu.memory_space<vmem>>, vector<1x8x128xf32>
    %6 = vector.shape_cast %5 : vector<1x8x128xf32> to vector<8x128xf32>
    %7 = vector.extract_strided_slice %6 {offsets = [0, 0], sizes = [1, 128], strides = [1, 1]} : vector<8x128xf32> to vector<1x128xf32>
    %8 = vector.extract_strided_slice %6 {offsets = [1, 0], sizes = [1, 128], strides = [1, 1]} : vector<8x128xf32> to vector<1x128xf32>
    %9 = vector.extract_strided_slice %6 {offsets = [2, 0], sizes = [1, 128], strides = [1, 1]} : vector<8x128xf32> to vector<1x128xf32>
    %cst = arith.constant dense<0.000000e+00> : vector<16x128xf32>
    %10 = tpu.matmul %2, %4, %cst {dimension_numbers = #tpu.dot_dimension_numbers<[1], [0], [0], [1], [0, 0, 1, 1], [], []>} : vector<16x32xbf16>, vector<32x128xbf16>, vector<16x128xf32> -> vector<16x128xf32>
    %11 = vector.broadcast %7 : vector<1x128xf32> to vector<16x128xf32>
    %12 = arith.addf %10, %11 : vector<16x128xf32>
    %cst_8 = arith.constant dense<0.000000e+00> : vector<16xf32>
    %13 = vector.multi_reduction <add>, %12, %cst_8 [1] : vector<16x128xf32> to vector<16xf32>
    %14 = vector.shape_cast %13 : vector<16xf32> to vector<16x1xf32>
    %15 = arith.mulf %12, %12 : vector<16x128xf32>
    %cst_9 = arith.constant dense<0.000000e+00> : vector<16xf32>
    %16 = vector.multi_reduction <add>, %15, %cst_9 [1] : vector<16x128xf32> to vector<16xf32>
    %17 = vector.shape_cast %16 : vector<16xf32> to vector<16x1xf32>
    %cst_10 = arith.constant 1.562500e-02 : f32
    %18 = vector.broadcast %cst_10 : f32 to vector<16x1xf32>
    %19 = arith.mulf %14, %18 : vector<16x1xf32>
    %cst_11 = arith.constant 1.562500e-02 : f32
    %20 = vector.broadcast %cst_11 : f32 to vector<16x1xf32>
    %21 = arith.mulf %17, %20 : vector<16x1xf32>
    %22 = arith.mulf %19, %19 : vector<16x1xf32>
    %23 = arith.subf %21, %22 : vector<16x1xf32>
    %24 = vector.broadcast %19 : vector<16x1xf32> to vector<16x128xf32>
    %25 = arith.subf %12, %24 : vector<16x128xf32>
    %cst_12 = arith.constant 9.99999974E-6 : f32
    %26 = vector.broadcast %cst_12 : f32 to vector<16x1xf32>
    %27 = arith.addf %23, %26 : vector<16x1xf32>
    %28 = math.rsqrt %27 : vector<16x1xf32>
    %29 = vector.broadcast %28 : vector<16x1xf32> to vector<16x128xf32>
    %30 = arith.mulf %25, %29 : vector<16x128xf32>
    %31 = vector.broadcast %8 : vector<1x128xf32> to vector<16x128xf32>
    %32 = arith.mulf %30, %31 : vector<16x128xf32>
    %33 = vector.broadcast %9 : vector<1x128xf32> to vector<16x128xf32>
    %34 = arith.addf %32, %33 : vector<16x128xf32>
    %cst_13 = arith.constant 5.000000e-01 : f32
    %35 = vector.broadcast %cst_13 : f32 to vector<16x128xf32>
    %36 = arith.mulf %35, %34 : vector<16x128xf32>
    %cst_14 = arith.constant 0.707106769 : f32
    %37 = vector.broadcast %cst_14 : f32 to vector<16x128xf32>
    %38 = arith.mulf %34, %37 : vector<16x128xf32>
    %39 = math.erf %38 : vector<16x128xf32>
    %cst_15 = arith.constant 1.000000e+00 : f32
    %40 = vector.broadcast %cst_15 : f32 to vector<16x128xf32>
    %41 = arith.addf %40, %39 : vector<16x128xf32>
    %42 = arith.mulf %36, %41 : vector<16x128xf32>
    %c0_16 = arith.constant 0 : index
    %c0_17 = arith.constant 0 : index
    %c0_18 = arith.constant 0 : index
    %43 = vector.load %arg5[%c0_16, %c0_17, %c0_18] : memref<1x16x128xf32, #tpu.memory_space<vmem>>, vector<1x16x128xf32>
    %44 = vector.shape_cast %43 : vector<1x16x128xf32> to vector<16x128xf32>
    %45 = vector.shape_cast %42 : vector<16x128xf32> to vector<1x16x128xf32>
    tpu.vector_store %arg5[%c0_16, %c0_17, %c0_18], %45 {strides = array<i32>} : memref<1x16x128xf32, #tpu.memory_space<vmem>>, vector<1x16x128xf32>,
    return
  }
  func.func @transform_0(%arg0: i32, %arg1: i32) -> (i32, i32, i32) {
    %c0_i32 = arith.constant 0 : i32
    %c0_i32_0 = arith.constant 0 : i32
    return %arg0, %arg1, %c0_i32 : i32, i32, i32
  }
  func.func @transform_1(%arg0: i32, %arg1: i32) -> (i32, i32, i32) {
    %c0_i32 = arith.constant 0 : i32
    %c0_i32_0 = arith.constant 0 : i32
    %c0_i32_1 = arith.constant 0 : i32
    return %arg0, %c0_i32, %c0_i32_0 : i32, i32, i32
  }
  func.func @transform_2(%arg0: i32, %arg1: i32) -> (i32, i32, i32) {
    %c0_i32 = arith.constant 0 : i32
    %c0_i32_0 = arith.constant 0 : i32
    %c0_i32_1 = arith.constant 0 : i32
    return %arg0, %c0_i32, %c0_i32_0 : i32, i32, i32
  }
  func.func @transform_3(%arg0: i32, %arg1: i32) -> (i32, i32, i32) {
    %c0_i32 = arith.constant 0 : i32
    %c0_i32_0 = arith.constant 0 : i32
    return %arg0, %arg1, %c0_i32 : i32, i32, i32
  }
}

</mosaic_0001>

<llo_original>
// kernel: data_format.1
$region0: #{data_format.1}
  #allocation0 [shape = 'u32[]', space=smem, size = 0x4, offset = 0x4, fixed_abs, tag = 'smem constant byte address 0x4 - core index']
  #allocation1 [shape = 'u32[144,128]{1,0:T(1,128)}', space=vmem, size = 0x12000, scoped, tag = 'internal scratch']
  %s0 = inlined_call_operand.vmem [shape: f32[2,16,32], index: 0, kind: input, shape index: {}]
  %s1 = inlined_call_operand.vmem [shape: bf16[2,32,128], index: 1, kind: input, shape index: {}]
  %s2 = inlined_call_operand.vmem [shape: f32[2,8,128], index: 2, kind: input, shape index: {}]
  %s3 = inlined_call_operand.vmem [shape: f32[2,16,128], index: 3, kind: output, shape index: {}]
  %s4 = sld [smem:[#allocation0]]
  $region45: #{data_format.1} parent=0
    _
  %s6 = ssub.s32 1, %s4
  %s7 = scalar_select 0, %s6, %s4
  loop: start=0, step=1, limit=4
  $region2: #{data_format.1} parent=0 // loop_pre_header
    _
  $region3: #{data_format.1} parent=0 // loop_header
    %s9 = sphi 0, %s13
    %p10 = scmp.ge.s32.totalorder %s9, 4
    %s16 = sphi 0, %s28
    %s17 = sphi 0, %s24
    %s18 = sphi 0, %s16
    %s19 = sphi 0, %s17
    %s20 = sphi 0, %s18
    %s21 = sphi 0, %s19
    %s33 = sphi 0, %s35
    %s36 = sphi 0, %s33
    %s37 = sphi 0, %s36
    %s53 = sphi 0, %s37
    %s59 = sphi 0, %s61
    %s62 = sphi 0, %s59
    %s63 = sphi 0, %s62
    %s79 = sphi 0, %s63
    %s85 = sphi 0, %s87
    %s88 = sphi 0, %s85
    %s89 = sphi 0, %s88
    %s105 = sphi 0, %s89
    %s113 = sphi 0, %s115
    %s116 = sphi 0, %s113
    %s117 = sphi 0, %s116
    %s133 = sphi 0, %s117
  $region4: #{data_format.1} parent=0 // loop_header_branch
    %12 = sbr.rel (%p10) target = $region8
  $region5: #{data_format.1} parent=0 // loop_body
    %s14 = ssub.s32 %s9, 1
    %s15 = ssub.s32 %s9, 2
    %s22 = sadd.s32 1, %s17
    %p23 = scmp.ge.s32.totalorder %s22, 1
    %s24 = scalar_select %p23, 0, %s22
    %s25 = sadd.s32 1, %s16
    %s26 = scalar_select %p23, %s25, %s16
    %p27 = scmp.ge.s32.totalorder %s26, 2
    %s28 = scalar_select %p27, 0, %s26
    %s29 = ssub.s32 %s16, %s28
    %s30 = ssub.s32 %s17, %s24
    %s31 = sor.u32 %s29, %s30
    %p32 = scmp.eq.s32.totalorder %s31, 0
    %s34 = sadd.s32 %s33, 1
    %s35 = scalar_select %p32, %s33, %s34
    %p38 = pneg %p32
    %p39 = scmp.eq.s32.totalorder %s9, 1
    %p40 = por %p38, %p39
    %p41 = scmp.ne.s32.totalorder %s33, %s36
    %p42 = scmp.eq.s32.totalorder %s9, 0
    %p43 = por %p41, %p42
    %p44 = scmp.ne.s32.totalorder %s33, %s36
    %p45 = scmp.eq.s32.totalorder %s14, 1
    %p46 = por %p44, %p45
    %p47 = scmp.ne.s32.totalorder %s36, %s37
    %p48 = scmp.eq.s32.totalorder %s14, 0
    %p49 = por %p47, %p48
    %p50 = scmp.ne.s32.totalorder %s36, %s37
    %p51 = scmp.eq.s32.totalorder %s15, 1
    %p52 = por %p50, %p51
    %p54 = scmp.ne.s32.totalorder %s37, %s53
    %p55 = scmp.eq.s32.totalorder %s15, 0
    %p56 = por %p54, %p55
    %s57 = ssub.s32 %s16, %s28
    %p58 = scmp.eq.s32.totalorder %s57, 0
    %s60 = sadd.s32 %s59, 1
    %s61 = scalar_select %p58, %s59, %s60
    %p64 = pneg %p58
    %p65 = scmp.eq.s32.totalorder %s9, 1
    %p66 = por %p64, %p65
    %p67 = scmp.ne.s32.totalorder %s59, %s62
    %p68 = scmp.eq.s32.totalorder %s9, 0
    %p69 = por %p67, %p68
    %p70 = scmp.ne.s32.totalorder %s59, %s62
    %p71 = scmp.eq.s32.totalorder %s14, 1
    %p72 = por %p70, %p71
    %p73 = scmp.ne.s32.totalorder %s62, %s63
    %p74 = scmp.eq.s32.totalorder %s14, 0
    %p75 = por %p73, %p74
    %p76 = scmp.ne.s32.totalorder %s62, %s63
    %p77 = scmp.eq.s32.totalorder %s15, 1
    %p78 = por %p76, %p77
    %p80 = scmp.ne.s32.totalorder %s63, %s79
    %p81 = scmp.eq.s32.totalorder %s15, 0
    %p82 = por %p80, %p81
    %s83 = ssub.s32 %s16, %s28
    %p84 = scmp.eq.s32.totalorder %s83, 0
    %s86 = sadd.s32 %s85, 1
    %s87 = scalar_select %p84, %s85, %s86
    %p90 = pneg %p84
    %p91 = scmp.eq.s32.totalorder %s9, 1
    %p92 = por %p90, %p91
    %p93 = scmp.ne.s32.totalorder %s85, %s88
    %p94 = scmp.eq.s32.totalorder %s9, 0
    %p95 = por %p93, %p94
    %p96 = scmp.ne.s32.totalorder %s85, %s88
    %p97 = scmp.eq.s32.totalorder %s14, 1
    %p98 = por %p96, %p97
    %p99 = scmp.ne.s32.totalorder %s88, %s89
    %p100 = scmp.eq.s32.totalorder %s14, 0
    %p101 = por %p99, %p100
    %p102 = scmp.ne.s32.totalorder %s88, %s89
    %p103 = scmp.eq.s32.totalorder %s15, 1
    %p104 = por %p102, %p103
    %p106 = scmp.ne.s32.totalorder %s89, %s105
    %p107 = scmp.eq.s32.totalorder %s15, 0
    %p108 = por %p106, %p107
    %s109 = ssub.s32 %s16, %s28
    %s110 = ssub.s32 %s17, %s24
    %s111 = sor.u32 %s109, %s110
    %p112 = scmp.eq.s32.totalorder %s111, 0
    %s114 = sadd.s32 %s113, 1
    %s115 = scalar_select %p112, %s113, %s114
    %p118 = pneg %p112
    %p119 = scmp.eq.s32.totalorder %s9, 1
    %p120 = por %p118, %p119
    %p121 = scmp.ne.s32.totalorder %s113, %s116
    %p122 = scmp.eq.s32.totalorder %s9, 0
    %p123 = por %p121, %p122
    %p124 = scmp.ne.s32.totalorder %s113, %s116
    %p125 = scmp.eq.s32.totalorder %s14, 1
    %p126 = por %p124, %p125
    %p127 = scmp.ne.s32.totalorder %s116, %s117
    %p128 = scmp.eq.s32.totalorder %s14, 0
    %p129 = por %p127, %p128
    %p130 = scmp.ne.s32.totalorder %s116, %s117
    %p131 = scmp.eq.s32.totalorder %s15, 1
    %p132 = por %p130, %p131
    %p134 = scmp.ne.s32.totalorder %s117, %s133
    %p135 = scmp.eq.s32.totalorder %s15, 0
    %p136 = por %p134, %p135
    %p137 = scmp.le.s32.totalorder 1, %s9
    %p138 = scmp.lt.s32.totalorder %s9, 3
    %p139 = pnand %p137, %p138
    %p140 = pneg %p139
    // Predicated region
    $region9: #{data_format.1} parent=5 // pred_check
      _
    $region10: #{data_format.1} parent=5 // pred_check_branch
      %142 = sbr.rel (%p139) target = $region12
    $region11: #{data_format.1} parent=5 // pred_region
      %s143 = ssub.s32 %s9, 1
    $region12: #{data_format.1} parent=5 // pred_fallthru
      _
    %p144 = scmp.lt.s32.totalorder %s9, 2
    // Predicated region
    $region13: #{data_format.1} parent=5 // pred_check
      %p145 = pneg %p144
    $region14: #{data_format.1} parent=5 // pred_check_branch
      %147 = sbr.rel (%p145) target = $region16
    $region15: #{data_format.1} parent=5 // pred_region
      // Predicated region
      $region17: #{data_format.1} parent=15 // pred_check
        %p148 = pneg %p43
      $region18: #{data_format.1} parent=15 // pred_check_branch
        %150 = sbr.rel (%p148) target = $region20
      $region19: #{data_format.1} parent=15 // pred_region
        %s151 = smul.u32 2, %s17
        %p152 = scmp.lt.s32.totalorder %s16, 1
        %s153 = scalar_select %p152, %s16, 1
        %p154 = scmp.lt.s32.totalorder %s151, 1
        %s155 = scalar_select %p154, %s151, 1
        %s156 = smul.addr %s153, 2
        %s157 = sadd.s32 %s155, %s156
        %s158 = smul.addr %s157, 8
        %s159 = scalar_lea.vmem %s0, %s158
        %s160 = smul.u32 2, %s17
      $region20: #{data_format.1} parent=15 // pred_fallthru
        _
      // Predicated region
      $region21: #{data_format.1} parent=15 // pred_check
        %p161 = pneg %p69
      $region22: #{data_format.1} parent=15 // pred_check_branch
        %163 = sbr.rel (%p161) target = $region24
      $region23: #{data_format.1} parent=15 // pred_region
        %p164 = scmp.lt.s32.totalorder %s16, 1
        %s165 = scalar_select %p164, %s16, 1
        %s166 = smul.addr %s165, 4
        %s167 = smul.addr %s166, 4
        %s168 = scalar_lea.vmem %s1, %s167
      $region24: #{data_format.1} parent=15 // pred_fallthru
        _
      // Predicated region
      $region25: #{data_format.1} parent=15 // pred_check
        %p169 = pneg %p95
      $region26: #{data_format.1} parent=15 // pred_check_branch
        %171 = sbr.rel (%p169) target = $region28
      $region27: #{data_format.1} parent=15 // pred_region
        %p172 = scmp.lt.s32.totalorder %s16, 1
        %s173 = scalar_select %p172, %s16, 1
        %s174 = smul.addr %s173, 8
        %s175 = scalar_lea.vmem %s2, %s174
      $region28: #{data_format.1} parent=15 // pred_fallthru
        _
    $region16: #{data_format.1} parent=5 // pred_fallthru
      _
    %p176 = scmp.le.s32.totalorder 1, %s9
    %p177 = scmp.lt.s32.totalorder %s9, 3
    %p178 = pnand %p176, %p177
    %p179 = pneg %p178
    // Predicated region
    $region29: #{data_format.1} parent=5 // pred_check
      _
    $region30: #{data_format.1} parent=5 // pred_check_branch
      %181 = sbr.rel (%p178) target = $region32
    $region31: #{data_format.1} parent=5 // pred_region
      %s182 = ssub.s32 %s9, 1
      %s183 = smul.u32 2, %s19
      %p184 = scmp.lt.s32.totalorder %s18, 1
      %s185 = scalar_select %p184, %s18, 1
      %p186 = scmp.lt.s32.totalorder %s183, 1
      %s187 = scalar_select %p186, %s183, 1
      %s188 = smul.addr %s185, 2
      %s189 = sadd.s32 %s187, %s188
      %s190 = smul.addr %s189, 8
      %s191 = scalar_lea.vmem %s0, %s190
      %p192 = pneg %p49
      %p193 = pneg %p46
      %p194 = scmp.lt.s32.totalorder %s18, 1
      %s195 = scalar_select %p194, %s18, 1
      %s196 = smul.addr %s195, 4
      %s197 = smul.addr %s196, 4
      %s198 = scalar_lea.vmem %s1, %s197
      %p199 = pneg %p75
      %p200 = pneg %p72
      %p201 = scmp.lt.s32.totalorder %s18, 1
      %s202 = scalar_select %p201, %s18, 1
      %s203 = smul.addr %s202, 8
      %s204 = scalar_lea.vmem %s2, %s203
      %p205 = pneg %p101
      %p206 = pneg %p98
      %p207 = pneg %p129
      %p208 = pneg %p126
      %s209 = smul.u32 2, %s19
      %p210 = scmp.lt.s32.totalorder %s18, 1
      %s211 = scalar_select %p210, %s18, 1
      %p212 = scmp.lt.s32.totalorder %s209, 1
      %s213 = scalar_select %p212, %s209, 1
      %s214 = smul.addr %s211, 2
      %s215 = sadd.s32 %s213, %s214
      %s216 = smul.addr %s215, 8
      %s217 = scalar_lea.vmem %s3, %s216
      %s218 = smul.u32 2, %s19
      %p219 = scmp.lt.s32.totalorder %s18, 1
      %s220 = scalar_select %p219, %s18, 1
      %p221 = scmp.lt.s32.totalorder %s218, 1
      %s222 = scalar_select %p221, %s218, 1
      %s223 = smul.addr %s220, 2
      %s224 = sadd.s32 %s222, %s223
      %s225 = smul.addr %s224, 8
      %s226 = scalar_lea.vmem %s0, %s225
      %s227 = smul.u32 2, %s19
      %p228 = scmp.lt.s32.totalorder %s18, 1
      %s229 = scalar_select %p228, %s18, 1
      %s230 = smul.addr %s229, 4
      %s231 = smul.addr %s230, 4
      %s232 = scalar_lea.vmem %s1, %s231
      %p233 = scmp.lt.s32.totalorder %s18, 1
      %s234 = scalar_select %p233, %s18, 1
      %s235 = smul.addr %s234, 8
      %s236 = scalar_lea.vmem %s2, %s235
      %s237 = smul.u32 2, %s19
      %p238 = scmp.lt.s32.totalorder %s18, 1
      %s239 = scalar_select %p238, %s18, 1
      %p240 = scmp.lt.s32.totalorder %s237, 1
      %s241 = scalar_select %p240, %s237, 1
      %s242 = smul.addr %s239, 2
      %s243 = sadd.s32 %s241, %s242
      %s244 = smul.addr %s243, 8
      %s245 = scalar_lea.vmem %s3, %s244
      %s246 = smul.u32 2, %s19
      %v248 = vld [vmem:[%s226] sm:$0xff]
      %v249 = vld [vmem:[%s226 + $0x8] sm:$0xff]
      %v250 = vpack.c.bf16 %v249, %v248
      %v251 = vld [vmem:[%s232] sm:$0xf]
      %v252 = vld [vmem:[%s232 + $0x4] sm:$0xf]
      %v253 = vld [vmem:[%s232 + $0x8] sm:$0xf]
      %v254 = vld [vmem:[%s232 + $0xc] sm:$0xf]
      %v255 = vld [vmem:[%s236] sm:$0xff]
      %v256 = vlaneseq
      %v257 = vshrl.u32 %v256, 7
      %v258 = vsub.s32 0, %v257
      %v259 = vrot.slane %v255, %v258
      %v264 = vunpack.c.l.b16 %v251
      %v265 = vunpack.c.l.b16 %v252
      %v266 = vunpack.c.l.b16 %v253
      %v267 = vunpack.c.l.b16 %v254
      %v268 = vpack.c.b16 %v265, %v264
      %v269 = vpack.c.b16 %v267, %v266
      %vm272 = vcmask 261120
      %v274 = vsel %vm272, %v250, 0
      %276 = vmatprep.subr.bf16.mxu0 0
      %277 = vmatpush1.bf16.msra.mxu0 %v268
      %278 = vmatprep.subr.bf16.mxu0 0
      %279 = vmatpush1.bf16.msra.mxu0 %v269
      %280 = vmatprep.subr.bf16.mxu0 0
      %281 = vmatpush1.bf16.msra.mxu0 0
      %282 = vmatprep.subr.bf16.mxu0 0
      %283 = vmatpush1.bf16.msra.mxu0 0
      %284 = vmatprep.subr.bf16.mxu0 0
      %285 = vmatpush1.bf16.msra.mxu0 0
      %286 = vmatprep.subr.bf16.mxu0 0
      %287 = vmatpush1.bf16.msra.mxu0 0
      %288 = vmatprep.subr.bf16.mxu0 0
      %289 = vmatpush1.bf16.msra.mxu0 0
      %290 = vmatprep.subr.bf16.mxu0 0
      %291 = vmatpush1.bf16.msra.mxu0 0
      %292 = vmatprep.subr.bf16.mxu0 0
      %293 = vmatpush1.bf16.msra.mxu0 0
      %294 = vmatprep.subr.bf16.mxu0 0
      %295 = vmatpush1.bf16.msra.mxu0 0
      %296 = vmatprep.subr.bf16.mxu0 0
      %297 = vmatpush1.bf16.msra.mxu0 0
      %298 = vmatprep.subr.bf16.mxu0 0
      %299 = vmatpush1.bf16.msra.mxu0 0
      %300 = vmatprep.subr.bf16.mxu0 0
      %301 = vmatpush1.bf16.msra.mxu0 0
      %302 = vmatprep.subr.bf16.mxu0 0
      %303 = vmatpush1.bf16.msra.mxu0 0
      %304 = vmatprep.subr.bf16.mxu0 0
      %305 = vmatpush1.bf16.msra.mxu0 0
      %306 = vmatprep.subr.bf16.mxu0 0
      %307 = vmatpush1.bf16.msra.mxu0 0
      %308 = vmatprep.mubr.bf16.mxu0 0
      %309 = vmatmul.mubr.bf16.gmra.mrb[0].mxu0 %v274
      %v310 = vpop.f32.mrb[0].mxu0
      %v311 = vadd.f32 %v259, %v310
      %v312 = vpop.f32.mrb[0].mxu0
      %v313 = vpop.f32.mrb[0].mxu0
      %v314 = vadd.f32 %v259, %v313
      %v315 = vpop.f32.mrb[0].mxu0
      %316 = vdwg.mxu0
      %317 = vadd.xlane.f32.xlu0 %v311
      %v318 = vpop.xlane.xlu0 %317
      %319 = vadd.xlane.f32.xlu0 %v314
      %v320 = vpop.xlane.xlu0 %319
      %v321 = vmul.f32 %v311, %v311
      %v322 = vmul.f32 %v314, %v314
      %323 = vadd.xlane.f32.xlu0 %v321
      %v324 = vpop.xlane.xlu0 %323
      %325 = vadd.xlane.f32.xlu0 %v322
      %v326 = vpop.xlane.xlu0 %325
      %v327 = vmul.f32 %v318, 0.015625
      %v328 = vmul.f32 %v320, 0.015625
      %v329 = vmul.f32 %v324, 0.015625
      %v330 = vmul.f32 %v326, 0.015625
      %v331 = vmul.f32 %v327, %v327
      %v332 = vmul.f32 %v328, %v328
      %v333 = vsub.f32 %v329, %v331
      %v334 = vsub.f32 %v330, %v332
      %v335 = vsub.f32 %v311, %v327
      %v336 = vsub.f32 %v314, %v328
      %v337 = vadd.f32 %v333, 1e-05
      %v338 = vadd.f32 %v334, 1e-05
      %v339 = vrsqrt.pop %v337
      %v340 = vrsqrt.pop %v338
      %v341 = vmul.f32 %v335, %v339
      %v342 = vmul.f32 %v336, %v340
      %v343 = vlaneseq
      %v344 = vshrl.u32 %v343, 7
      %v345 = vsub.s32 1, %v344
      %v346 = vrot.slane %v255, %v345
      %v347 = vmul.f32 %v341, %v346
      %v348 = vmul.f32 %v342, %v346
      %v349 = vlaneseq
      %v350 = vshrl.u32 %v349, 7
      %v351 = vsub.s32 2, %v350
      %v352 = vrot.slane %v255, %v351
      %v353 = vadd.f32 %v347, %v352
      %v354 = vadd.f32 %v348, %v352
      %v355 = vmul.f32 %v353, 0.5
      %v356 = vmul.f32 %v354, 0.5
      %v357 = vmul.f32 %v353, 0.70710677
      %v358 = vmul.f32 %v354, 0.70710677
      %v359 = verf.f32.pop %v357
      %v360 = verf.f32.pop %v358
      %v361 = vadd.f32 %v359, 1.0
      %v362 = vadd.f32 %v360, 1.0
      %v363 = vmul.f32 %v355, %v361
      %v364 = vmul.f32 %v356, %v362
      %365 = vst [vmem:[%s245] sm:$0xff] %v363
      %366 = vst [vmem:[%s245 + $0x8] sm:$0xff] %v364
      %s367 = smul.u32 2, %s19
      %p368 = scmp.lt.s32.totalorder %s18, 1
      %s369 = scalar_select %p368, %s18, 1
      %p370 = scmp.lt.s32.totalorder %s367, 1
      %s371 = scalar_select %p370, %s367, 1
      %s372 = smul.addr %s369, 2
      %s373 = sadd.s32 %s371, %s372
      %s374 = smul.addr %s373, 8
      %s375 = scalar_lea.vmem %s3, %s374
      // Predicated region
      $region33: #{data_format.1} parent=31 // pred_check
        %p376 = pneg %p126
      $region34: #{data_format.1} parent=31 // pred_check_branch
        %378 = sbr.rel (%p376) target = $region36
      $region35: #{data_format.1} parent=31 // pred_region
        %s379 = smul.u32 2, %s19
      $region36: #{data_format.1} parent=31 // pred_fallthru
        _
    $region32: #{data_format.1} parent=5 // pred_fallthru
      _
    %p380 = scmp.le.s32.totalorder 2, %s9
    // Predicated region
    $region37: #{data_format.1} parent=5 // pred_check
      %p381 = pneg %p380
    $region38: #{data_format.1} parent=5 // pred_check_branch
      %383 = sbr.rel (%p381) target = $region40
    $region39: #{data_format.1} parent=5 // pred_region
      %s384 = ssub.s32 %s9, 2
      // Predicated region
      $region41: #{data_format.1} parent=39 // pred_check
        %p385 = pneg %p132
      $region42: #{data_format.1} parent=39 // pred_check_branch
        %387 = sbr.rel (%p385) target = $region44
      $region43: #{data_format.1} parent=39 // pred_region
        %s388 = smul.u32 2, %s21
        %p389 = scmp.lt.s32.totalorder %s20, 1
        %s390 = scalar_select %p389, %s20, 1
        %p391 = scmp.lt.s32.totalorder %s388, 1
        %s392 = scalar_select %p391, %s388, 1
        %s393 = smul.addr %s390, 2
        %s394 = sadd.s32 %s392, %s393
        %s395 = smul.addr %s394, 8
        %s396 = scalar_lea.vmem %s3, %s395
      $region44: #{data_format.1} parent=39 // pred_fallthru
        _
    $region40: #{data_format.1} parent=5 // pred_fallthru
      _
  $region6: #{data_format.1} parent=0 // loop_footer
    %s13 = sadd.s32 1, %s9
  $region7: #{data_format.1} parent=0 // loop_footer_branch
    %8 = sbr.rel target = $region3
  $region8: #{data_format.1} parent=0 // loop_exit
    _

</llo_original>
